<compile_context>
chip_gen: v5e
topology: v5e:2x2
jax: 0.10.0
libtpu: 0.0.40
codegen_flags: <defaults>
</compile_context>

<pallas_src>
import jax
import jax.numpy as jnp
from jax.experimental import pallas as pl
from jax.experimental.pallas import tpu as pltpu


def _h_sigmoid_kernel(x_ref, o_ref):
    x = x_ref[...]
    # h_sigmoid(x) = ReLU6(x + 3) / 6
    o_ref[...] = (jnp.clip(x + 3.0, 0.0, 6.0) * (1.0 / 6.0)).astype(o_ref.dtype)


def h_sigmoid(
    x: jax.Array,
    *,
    target_block_bytes: int = 4 * 1024 * 1024,   # ~4 MiB/buffer
    vmem_limit_bytes: int = 32 * 1024 * 1024,    # explicit scoped-VMEM limit (safe on v5e/v6e/v7x)
    donate_input: bool = False,                  # alias output onto input buffer
) -> jax.Array:
    """Elementwise h_sigmoid on an arbitrary-shape (e.g. NCHW) tensor."""
    orig_shape = x.shape
    dtype = x.dtype
    n = x.size
    if n == 0:
        return x

    LANE = 128
    flat = jnp.ravel(x)  # zero-copy for a contiguous array

    # Pad only if the element count is not a multiple of 128 (rare for real
    # activation shapes; h_sigmoid(0) on the pad region is sliced off after).
    # TODO(synk): fuse the <=127-element tail into the kernel via a masked
    # store on the last block to avoid the concatenate/slice HBM passes.
    pad = (-n) % LANE
    if pad:
        flat = jnp.concatenate([flat, jnp.zeros((pad,), dtype=dtype)])
    padded = n + pad

    # Lane-dense contiguous slab: (rows, 128).
    W = LANE
    rows = padded // W
    itemsize = jnp.dtype(dtype).itemsize
    total_bytes = rows * W * itemsize

    # Sublane-aligned row tile sized for ~target_block_bytes per buffer.
    sublane = {4: 8, 2: 16, 1: 32}.get(itemsize, 8)
    tr = target_block_bytes // (W * itemsize)
    tr = max(sublane, (tr // sublane) * sublane)

    # Guarantee >= 2 blocks for tensors over ~1 MiB so ("parallel",) can
    # shard the grid across v7x's two TensorCores (and overlap DMA/compute).
    if total_bytes > (1 << 20):
        half = max(sublane, ((pl.cdiv(rows, 2)) // sublane) * sublane)
        tr = min(tr, half)

    tr = min(tr, rows)               # full row extent is always a legal block dim
    grid = (pl.cdiv(rows, tr),)      # ragged last block is masked by Pallas

    x2d = flat.reshape(rows, W)      # zero-copy reshape

    cost = pl.CostEstimate(
        flops=4 * padded,                       # add, max, min, mul per element
        transcendentals=0,
        bytes_accessed=2 * padded * itemsize,   # one read + one write
    )

    out2d = pl.pallas_call(
        _h_sigmoid_kernel,
        out_shape=jax.ShapeDtypeStruct((rows, W), dtype),
        grid_spec=pltpu.PrefetchScalarGridSpec(
            num_scalar_prefetch=0,
            grid=grid,
            in_specs=[pl.BlockSpec((tr, W), lambda i: (i, 0))],
            out_specs=pl.BlockSpec((tr, W), lambda i: (i, 0)),
        ),
        compiler_params=pltpu.CompilerParams(
            dimension_semantics=("parallel",),   # shards grid across TCs on v7x
            vmem_limit_bytes=vmem_limit_bytes,
        ),
        cost_estimate=cost,
        input_output_aliases=({0: 0} if donate_input else {}),
    )(x2d)

    out_flat = out2d.reshape(-1)
    if pad:
        out_flat = out_flat[:n]
    return out_flat.reshape(orig_shape)


if __name__ == "__main__":
    key = jax.random.PRNGKey(0)
    # NCHW, matching PyTorch convention: batch=2, channels=4, H=W=16
    x = jax.random.normal(key, (2, 4, 16, 16), dtype=jnp.float32) * 4.0

    out = h_sigmoid(x)
    out = jax.block_until_ready(out)

    # Reference check in plain JAX (matches the PyTorch module exactly).
    ref = jnp.clip(x + 3.0, 0.0, 6.0) / 6.0
    assert out.shape == x.shape and out.dtype == x.dtype
    assert jnp.allclose(out, ref, atol=2e-6, rtol=1e-6)

    print("KERNEL_OK")
</pallas_src>

<mosaic_0001>
module attributes {stable_mosaic.version = 11 : i64} {
  func.func @_h_sigmoid_kernel(%arg0: i32, %arg1: memref<16x128xf32, #tpu.memory_space<vmem>>, %arg2: memref<16x128xf32, #tpu.memory_space<vmem>>) attributes {dimension_semantics = [#tpu.dimension_semantics<parallel>], iteration_bounds = array<i64: 1>, scalar_prefetch = 0 : i64, scratch_operands = 0 : i64, tpu.core_type = #tpu.core_type<tc>, window_params = [{transform_indices = @transform_0, window_bounds = array<i64: 16, 128>}, {transform_indices = @transform_1, window_bounds = array<i64: 16, 128>}]} {
    %c0 = arith.constant 0 : index
    %c0_0 = arith.constant 0 : index
    %0 = vector.load %arg1[%c0, %c0_0] : memref<16x128xf32, #tpu.memory_space<vmem>>, vector<16x128xf32>
    %cst = arith.constant 3.000000e+00 : f32
    %1 = vector.broadcast %cst : f32 to vector<16x128xf32>
    %2 = arith.addf %0, %1 : vector<16x128xf32>
    %cst_1 = arith.constant 0.000000e+00 : f32
    %cst_2 = arith.constant 6.000000e+00 : f32
    %3 = vector.broadcast %cst_1 : f32 to vector<16x128xf32>
    %4 = arith.maximumf %3, %2 : vector<16x128xf32>
    %5 = vector.broadcast %cst_2 : f32 to vector<16x128xf32>
    %6 = arith.minimumf %5, %4 : vector<16x128xf32>
    %cst_3 = arith.constant 0.166666672 : f32
    %7 = vector.broadcast %cst_3 : f32 to vector<16x128xf32>
    %8 = arith.mulf %6, %7 : vector<16x128xf32>
    %c0_4 = arith.constant 0 : index
    %c0_5 = arith.constant 0 : index
    %9 = vector.load %arg2[%c0_4, %c0_5] : memref<16x128xf32, #tpu.memory_space<vmem>>, vector<16x128xf32>
    tpu.vector_store %arg2[%c0_4, %c0_5], %8 {strides = array<i32>} : memref<16x128xf32, #tpu.memory_space<vmem>>, vector<16x128xf32>,
    return
  }
  func.func @transform_0(%arg0: i32) -> (i32, i32) {
    %c0_i32 = arith.constant 0 : i32
    %c0_i32_0 = arith.constant 0 : i32
    return %arg0, %c0_i32 : i32, i32
  }
  func.func @transform_1(%arg0: i32) -> (i32, i32) {
    %c0_i32 = arith.constant 0 : i32
    %c0_i32_0 = arith.constant 0 : i32
    return %arg0, %c0_i32 : i32, i32
  }
}

</mosaic_0001>

<llo_original>
// kernel: tpu_custom_call.1
$region0: #{tpu_custom_call.1}
  #allocation0 [shape = 'u32[]', space=smem, size = 0x4, offset = 0x4, fixed_abs, tag = 'smem constant byte address 0x4 - core index']
  #allocation1 [shape = 'u32[72,128]{1,0:T(1,128)}', space=vmem, size = 0x9000, scoped, tag = 'internal scratch']
  %s0 = inlined_call_operand.hbm [shape: f32[16,128], index: 0, kind: input, shape index: {}]
  %s1 = inlined_call_operand.hbm [shape: f32[16,128], index: 1, kind: output, shape index: {}]
  %s2 = sld [smem:[#allocation0]]
  $region18: #{tpu_custom_call.1} parent=0
    _
  %s4 = ssub.s32 1, %s2
  %s5 = scalar_select 0, %s4, %s2
  $region1: #{tpu_custom_call.1} parent=0
    #allocation2 [shape = 'u8[8192]{0}', space=vmem, size = 0x2000, scoped, tag = 'input window, operand 0, single buffered']
    #allocation3 [shape = 's32[1]{0}', space=sflag, size = 0x4, scoped, tag = 'scoped memory for tpu_custom_call.1']
    #allocation4 [shape = 's32[1]{0}', space=sflag, size = 0x4, scoped, tag = 'scoped memory for tpu_custom_call.1']
    #allocation5 [shape = 'u8[8192]{0}', space=vmem, size = 0x2000, scoped, tag = 'output window, operand 0, single buffered']
    %6 = vsyncpa [#allocation3], 0
    %7 = vsyncpa [#allocation4], 0
    // Predicated region
    $region2: #{tpu_custom_call.1} parent=1 // pred_check
      _
    $region3: #{tpu_custom_call.1} parent=1 // pred_check_branch
      %9 = sbr.rel (0) target = $region5
    $region4: #{tpu_custom_call.1} parent=1 // pred_region
      %11 = vsyncadd [#allocation3], 0
      %s12 = sshll.u32 %s0, 4
      %s13 = int_to_ptr.hbm [resolvable:$true] %s12
      %s14 = sshll.u32 [#allocation2], 4
      %s15 = int_to_ptr.vmem [resolvable:$true] %s14
      %20 = dma.hbm_to_vmem [thread:$0]  %s13, 256, %s15, [#allocation3], 128, 128, 8
    $region5: #{tpu_custom_call.1} parent=1 // pred_fallthru
      _
    // Predicated region
    $region6: #{tpu_custom_call.1} parent=1 // pred_check
      _
    $region7: #{tpu_custom_call.1} parent=1 // pred_check_branch
      %22 = sbr.rel (0) target = $region9
    $region8: #{tpu_custom_call.1} parent=1 // pred_region
      %24 = dma.done [#allocation3], 256
    $region9: #{tpu_custom_call.1} parent=1 // pred_fallthru
      _
    %v25 = vld [vmem:[#allocation2] sm:$0xff]
    %v26 = vld [vmem:[#allocation2 + $0x8] sm:$0xff]
    %v27 = vadd.f32 %v25, 3.0
    %v28 = vadd.f32 %v26, 3.0
    %v29 = vmax.f32 %v27, 0.0
    %v30 = vmax.f32 %v28, 0.0
    %v31 = vmin.f32 %v29, 6.0
    %v32 = vmin.f32 %v30, 6.0
    %v33 = vmul.f32 %v31, 0.16666667
    %v34 = vmul.f32 %v32, 0.16666667
    %35 = vst [vmem:[#allocation5] sm:$0xff] %v33
    %36 = vst [vmem:[#allocation5 + $0x8] sm:$0xff] %v34
    // Predicated region
    $region10: #{tpu_custom_call.1} parent=1 // pred_check
      _
    $region11: #{tpu_custom_call.1} parent=1 // pred_check_branch
      %38 = sbr.rel (0) target = $region13
    $region12: #{tpu_custom_call.1} parent=1 // pred_region
      %40 = vsyncadd [#allocation4], 0
      %s41 = sshll.u32 [#allocation5], 4
      %s42 = int_to_ptr.vmem [resolvable:$true] %s41
      %s43 = sshll.u32 %s1, 4
      %s44 = int_to_ptr.hbm [resolvable:$true] %s43
      %49 = dma.vmem_to_hbm [thread:$0]  %s42, 256, %s44, [#allocation4], 128, 128, 8
    $region13: #{tpu_custom_call.1} parent=1 // pred_fallthru
      _
    // Predicated region
    $region14: #{tpu_custom_call.1} parent=1 // pred_check
      _
    $region15: #{tpu_custom_call.1} parent=1 // pred_check_branch
      %51 = sbr.rel (0) target = $region17
    $region16: #{tpu_custom_call.1} parent=1 // pred_region
      %53 = dma.done [#allocation4], 256
    $region17: #{tpu_custom_call.1} parent=1 // pred_fallthru
      _
    %54 = vsyncpa [#allocation3], 1
    %55 = vsyncpa [#allocation4], 1

</llo_original>
